<compile_context>
chip_gen: v7x
topology: tpu7x:2x2x1
jax: 0.10.0
libtpu: 0.0.40
codegen_flags: <defaults>
</compile_context>

<pallas_src>
import functools

import jax
import jax.numpy as jnp
from jax import lax
from jax.experimental import pallas as pl
from jax.experimental.pallas import tpu as pltpu


def _decoder_kernel(z_ref, w1_ref, b1_ref, w2_ref, b2_ref, w3_ref, b3_ref, o_ref,
                    *, precision):
    # z_ref: (T, L) batch-major tile straight from HBM (no host transpose).
    # Contract the L axis of w1 with the L axis of z -> h1 is (H, T) feature-major,
    # keeping the batch tile on the lane axis for every layer and for the output.
    z = z_ref[...]
    h1 = lax.dot_general(w1_ref[...], z, (((1,), (1,)), ((), ())),
                         preferred_element_type=jnp.float32, precision=precision)
    h1 = jnp.maximum(h1 + b1_ref[...], 0.0)
    h2 = lax.dot_general(w2_ref[...], h1, (((1,), (0,)), ((), ())),
                         preferred_element_type=jnp.float32, precision=precision)
    h2 = jnp.maximum(h2 + b2_ref[...], 0.0)
    out = lax.dot_general(w3_ref[...], h2, (((1,), (0,)), ((), ())),
                          preferred_element_type=jnp.float32, precision=precision)
    o_ref[...] = (out + b3_ref[...]).astype(o_ref.dtype)


def _round_up(x, m):
    return ((x + m - 1) // m) * m


def _plan_grid(B, max_tile):
    """Pick (batch_tile, n_steps, padded_B).

    * tile as large as allowed (default 8192 lanes) so per-step pipeline overhead
      (~0.35 us) is amortised over >=0.5 MB of z per step.
    * >=2 grid steps once the batch is big enough, so the "parallel" grid axis can
      shard across v7x's two TensorCores.
    * tile is a multiple of 128 for multi-step grids (lane-dense output blocks);
      B is padded up to tile * n_steps (pad copy only for awkward batch sizes).
    """
    n = max(1, -(-B // max_tile))
    if n == 1 and B >= 1024:
        n = 2                                  # v7x: feed the second TensorCore
    if n == 1:
        tile = _round_up(B, 8)                 # single block: minimal sublane padding
    else:
        tile = _round_up(-(-B // n), 128)
    return tile, n, tile * n


def decoder_forward(z, params, *, max_batch_tile=8192, precision=None):
    """z: [B, latent_dim] float32 -> [B, output_dim] float32 (Decoder.forward)."""
    w1, b1, w2, b2, w3, b3 = params            # torch layout: w (out, in), b (out, 1)
    B, L = z.shape
    H = w1.shape[0]
    O = w3.shape[0]

    tile, n_steps, Bp = _plan_grid(B, max_batch_tile)
    if Bp != B:
        # Awkward batch sizes: pad rather than fall back to one giant VMEM block.
        z = jnp.pad(z, ((0, Bp - B), (0, 0)))

    flops = 2 * Bp * (L * H + H * H + H * O)
    bytes_accessed = 4 * (Bp * L + Bp * O + H * L + H * H + O * H + 2 * H + O)

    kernel = functools.partial(_decoder_kernel, precision=precision)

    out_fm = pl.pallas_call(
        kernel,
        out_shape=jax.ShapeDtypeStruct((O, Bp), jnp.float32),
        grid=(n_steps,),
        in_specs=[
            pl.BlockSpec((tile, L), lambda i: (i, 0)),   # z: batch-major, streamed
            pl.BlockSpec((H, L), lambda i: (0, 0)),      # w1 (VMEM resident)
            pl.BlockSpec((H, 1), lambda i: (0, 0)),      # b1
            pl.BlockSpec((H, H), lambda i: (0, 0)),      # w2
            pl.BlockSpec((H, 1), lambda i: (0, 0)),      # b2
            pl.BlockSpec((O, H), lambda i: (0, 0)),      # w3
            pl.BlockSpec((O, 1), lambda i: (0, 0)),      # b3
        ],
        out_specs=pl.BlockSpec((O, tile), lambda i: (0, i)),  # lane-dense output row
        compiler_params=pltpu.CompilerParams(
            dimension_semantics=("parallel",),
            vmem_limit_bytes=32 * 1024 * 1024,
        ),
        cost_estimate=pl.CostEstimate(
            flops=flops, transcendentals=0, bytes_accessed=bytes_accessed
        ),
    )(z, w1, b1, w2, b2, w3, b3)

    if O == 1:
        # (1, Bp) -> (B, 1): free row-major reshape + small slice, no transpose pass.
        return out_fm.reshape(Bp, 1)[:B]
    return out_fm[:, :B].T


def init_decoder_params(key, latent_dim, hidden_dim, output_dim=1):
    """torch.nn.Linear-style init (U[-1/sqrt(fan_in), 1/sqrt(fan_in)]).
    Weights in PyTorch [out, in] layout, biases stored as [out, 1] columns."""
    keys = jax.random.split(key, 6)

    def linear(kw, kb, fan_in, fan_out):
        bound = 1.0 / jnp.sqrt(jnp.float32(fan_in))
        w = jax.random.uniform(kw, (fan_out, fan_in), jnp.float32, -bound, bound)
        b = jax.random.uniform(kb, (fan_out, 1), jnp.float32, -bound, bound)
        return w, b

    w1, b1 = linear(keys[0], keys[1], latent_dim, hidden_dim)
    w2, b2 = linear(keys[2], keys[3], hidden_dim, hidden_dim)
    w3, b3 = linear(keys[4], keys[5], hidden_dim, output_dim)
    return (w1, b1, w2, b2, w3, b3)


def decoder_reference(z, params):
    w1, b1, w2, b2, w3, b3 = params
    h1 = jnp.maximum(z @ w1.T + b1[:, 0], 0.0)
    h2 = jnp.maximum(h1 @ w2.T + b2[:, 0], 0.0)
    return h2 @ w3.T + b3[:, 0]


if __name__ == "__main__":
    latent_dim, hidden_dim, output_dim = 16, 32, 1

    key = jax.random.PRNGKey(0)
    k_params, k_z1, k_z2 = jax.random.split(key, 3)
    params = init_decoder_params(k_params, latent_dim, hidden_dim, output_dim)

    # Small batch: single full block (grid=(1,)).
    z_small = jax.random.normal(k_z1, (256, latent_dim), dtype=jnp.float32)
    ref_small = decoder_reference(z_small, params)
    out_small = jax.block_until_ready(decoder_forward(z_small, params))
    assert out_small.shape == (256, output_dim)
    assert jnp.allclose(out_small, ref_small, atol=1e-5, rtol=1e-5), "full-block mismatch"

    # Multi-step grid (2 x 128-lane tiles): exercises the pipelined / dual-TC path.
    out_tiled = jax.block_until_ready(
        decoder_forward(z_small, params, max_batch_tile=128))
    assert jnp.allclose(out_tiled, ref_small, atol=1e-5, rtol=1e-5), "tiled mismatch"

    # Awkward batch: forces >=2 steps + padding + output slice-back.
    z_odd = jax.random.normal(k_z2, (1300, latent_dim), dtype=jnp.float32)
    ref_odd = decoder_reference(z_odd, params)
    out_odd = jax.block_until_ready(decoder_forward(z_odd, params))
    assert out_odd.shape == (1300, output_dim)
    assert jnp.allclose(out_odd, ref_odd, atol=1e-5, rtol=1e-5), "padded-batch mismatch"

    print("KERNEL_OK")
</pallas_src>

<mosaic_0001>
module attributes {stable_mosaic.version = 11 : i64} {
  func.func @_decoder_kernel(%arg0: i32, %arg1: memref<256x16xf32, #tpu.memory_space<vmem>>, %arg2: memref<32x16xf32, #tpu.memory_space<vmem>>, %arg3: memref<32x1xf32, #tpu.memory_space<vmem>>, %arg4: memref<32x32xf32, #tpu.memory_space<vmem>>, %arg5: memref<32x1xf32, #tpu.memory_space<vmem>>, %arg6: memref<1x32xf32, #tpu.memory_space<vmem>>, %arg7: memref<1x1xf32, #tpu.memory_space<vmem>>, %arg8: memref<1x256xf32, #tpu.memory_space<vmem>>) attributes {dimension_semantics = [#tpu.dimension_semantics<parallel>], iteration_bounds = array<i64: 1>, scalar_prefetch = 0 : i64, scratch_operands = 0 : i64, tpu.core_type = #tpu.core_type<tc>, window_params = [{transform_indices = @transform_0, window_bounds = array<i64: 256, 16>}, {pipeline_mode = #tpu.pipeline_mode<synchronous>, transform_indices = @transform_1, window_bounds = array<i64: 32, 16>}, {pipeline_mode = #tpu.pipeline_mode<synchronous>, transform_indices = @transform_2, window_bounds = array<i64: 32, 1>}, {pipeline_mode = #tpu.pipeline_mode<synchronous>, transform_indices = @transform_3, window_bounds = array<i64: 32, 32>}, {pipeline_mode = #tpu.pipeline_mode<synchronous>, transform_indices = @transform_4, window_bounds = array<i64: 32, 1>}, {pipeline_mode = #tpu.pipeline_mode<synchronous>, transform_indices = @transform_5, window_bounds = array<i64: 1, 32>}, {pipeline_mode = #tpu.pipeline_mode<synchronous>, transform_indices = @transform_6, window_bounds = array<i64: 1, 1>}, {transform_indices = @transform_7, window_bounds = array<i64: 1, 256>}]} {
    %c0 = arith.constant 0 : index
    %c0_0 = arith.constant 0 : index
    %0 = vector.load %arg1[%c0, %c0_0] : memref<256x16xf32, #tpu.memory_space<vmem>>, vector<256x16xf32>
    %c0_1 = arith.constant 0 : index
    %c0_2 = arith.constant 0 : index
    %1 = vector.load %arg2[%c0_1, %c0_2] : memref<32x16xf32, #tpu.memory_space<vmem>>, vector<32x16xf32>
    %cst = arith.constant dense<0.000000e+00> : vector<32x256xf32>
    %2 = tpu.matmul %1, %0, %cst {dimension_numbers = #tpu.dot_dimension_numbers<[1], [1], [0], [0], [0, 0, 1, 0], [], []>} : vector<32x16xf32>, vector<256x16xf32>, vector<32x256xf32> -> vector<32x256xf32>
    %c0_3 = arith.constant 0 : index
    %c0_4 = arith.constant 0 : index
    %3 = vector.load %arg3[%c0_3, %c0_4] : memref<32x1xf32, #tpu.memory_space<vmem>>, vector<32x1xf32>
    %4 = vector.broadcast %3 : vector<32x1xf32> to vector<32x256xf32>
    %5 = arith.addf %2, %4 : vector<32x256xf32>
    %cst_5 = arith.constant 0.000000e+00 : f32
    %6 = vector.broadcast %cst_5 : f32 to vector<32x256xf32>
    %7 = arith.maximumf %5, %6 : vector<32x256xf32>
    %c0_6 = arith.constant 0 : index
    %c0_7 = arith.constant 0 : index
    %8 = vector.load %arg4[%c0_6, %c0_7] : memref<32x32xf32, #tpu.memory_space<vmem>>, vector<32x32xf32>
    %cst_8 = arith.constant dense<0.000000e+00> : vector<32x256xf32>
    %9 = tpu.matmul %8, %7, %cst_8 {dimension_numbers = #tpu.dot_dimension_numbers<[1], [0], [0], [1], [0, 0, 1, 1], [], []>} : vector<32x32xf32>, vector<32x256xf32>, vector<32x256xf32> -> vector<32x256xf32>
    %c0_9 = arith.constant 0 : index
    %c0_10 = arith.constant 0 : index
    %10 = vector.load %arg5[%c0_9, %c0_10] : memref<32x1xf32, #tpu.memory_space<vmem>>, vector<32x1xf32>
    %11 = vector.broadcast %10 : vector<32x1xf32> to vector<32x256xf32>
    %12 = arith.addf %9, %11 : vector<32x256xf32>
    %cst_11 = arith.constant 0.000000e+00 : f32
    %13 = vector.broadcast %cst_11 : f32 to vector<32x256xf32>
    %14 = arith.maximumf %12, %13 : vector<32x256xf32>
    %c0_12 = arith.constant 0 : index
    %c0_13 = arith.constant 0 : index
    %15 = vector.load %arg6[%c0_12, %c0_13] : memref<1x32xf32, #tpu.memory_space<vmem>>, vector<1x32xf32>
    %cst_14 = arith.constant dense<0.000000e+00> : vector<1x256xf32>
    %16 = tpu.matmul %15, %14, %cst_14 {dimension_numbers = #tpu.dot_dimension_numbers<[1], [0], [0], [1], [0, 0, 1, 1], [], []>} : vector<1x32xf32>, vector<32x256xf32>, vector<1x256xf32> -> vector<1x256xf32>
    %c0_15 = arith.constant 0 : index
    %c0_16 = arith.constant 0 : index
    %17 = vector.load %arg7[%c0_15, %c0_16] : memref<1x1xf32, #tpu.memory_space<vmem>>, vector<1x1xf32>
    %18 = vector.broadcast %17 : vector<1x1xf32> to vector<1x256xf32>
    %19 = arith.addf %16, %18 : vector<1x256xf32>
    %c0_17 = arith.constant 0 : index
    %c0_18 = arith.constant 0 : index
    %20 = vector.load %arg8[%c0_17, %c0_18] : memref<1x256xf32, #tpu.memory_space<vmem>>, vector<1x256xf32>
    tpu.vector_store %arg8[%c0_17, %c0_18], %19 {strides = array<i32>} : memref<1x256xf32, #tpu.memory_space<vmem>>, vector<1x256xf32>,
    return
  }
  func.func @transform_0(%arg0: i32) -> (i32, i32) {
    %c0_i32 = arith.constant 0 : i32
    %c0_i32_0 = arith.constant 0 : i32
    return %arg0, %c0_i32 : i32, i32
  }
  func.func @transform_1(%arg0: i32) -> (i32, i32) {
    %c0_i32 = arith.constant 0 : i32
    %c0_i32_0 = arith.constant 0 : i32
    %c0_i32_1 = arith.constant 0 : i32
    return %c0_i32, %c0_i32_0 : i32, i32
  }
  func.func @transform_2(%arg0: i32) -> (i32, i32) {
    %c0_i32 = arith.constant 0 : i32
    %c0_i32_0 = arith.constant 0 : i32
    %c0_i32_1 = arith.constant 0 : i32
    return %c0_i32, %c0_i32_0 : i32, i32
  }
  func.func @transform_3(%arg0: i32) -> (i32, i32) {
    %c0_i32 = arith.constant 0 : i32
    %c0_i32_0 = arith.constant 0 : i32
    %c0_i32_1 = arith.constant 0 : i32
    return %c0_i32, %c0_i32_0 : i32, i32
  }
  func.func @transform_4(%arg0: i32) -> (i32, i32) {
    %c0_i32 = arith.constant 0 : i32
    %c0_i32_0 = arith.constant 0 : i32
    %c0_i32_1 = arith.constant 0 : i32
    return %c0_i32, %c0_i32_0 : i32, i32
  }
  func.func @transform_5(%arg0: i32) -> (i32, i32) {
    %c0_i32 = arith.constant 0 : i32
    %c0_i32_0 = arith.constant 0 : i32
    %c0_i32_1 = arith.constant 0 : i32
    return %c0_i32, %c0_i32_0 : i32, i32
  }
  func.func @transform_6(%arg0: i32) -> (i32, i32) {
    %c0_i32 = arith.constant 0 : i32
    %c0_i32_0 = arith.constant 0 : i32
    %c0_i32_1 = arith.constant 0 : i32
    return %c0_i32, %c0_i32_0 : i32, i32
  }
  func.func @transform_7(%arg0: i32) -> (i32, i32) {
    %c0_i32 = arith.constant 0 : i32
    %c0_i32_0 = arith.constant 0 : i32
    return %c0_i32, %arg0 : i32, i32
  }
}

</mosaic_0001>

<llo_original>
// kernel: tpu_custom_call.1
$region0: #{tpu_custom_call.1}
  #allocation0 [shape = 'u32[]', space=smem, size = 0x4, offset = 0x4, fixed_abs, tag = 'smem constant byte address 0x4 - core index']
  #allocation1 [shape = 'u32[144,128]{1,0:T(1,128)}', space=vmem, size = 0x12000, scoped, tag = 'internal scratch']
  #allocation2 [shape = 'f32[1,1]{1,0:T(1,128)S(1)}', space=vmem, size = 0x200, scoped, tag = 'scoped memory for tpu_custom_call.1']
  %s0 = inlined_call_operand.vmem [shape: f32[256,16], index: 0, kind: input, shape index: {}]
  %s1 = inlined_call_operand.vmem [shape: f32[32,16], index: 1, kind: input, shape index: {}]
  %s2 = inlined_call_operand.vmem [shape: f32[32,1], index: 2, kind: input, shape index: {}]
  %s3 = inlined_call_operand.vmem [shape: f32[32,32], index: 3, kind: input, shape index: {}]
  %s4 = inlined_call_operand.vmem [shape: f32[32,1], index: 4, kind: input, shape index: {}]
  %s5 = inlined_call_operand.vmem [shape: f32[1,32], index: 5, kind: input, shape index: {}]
  %s6 = inlined_call_operand.<no memory space> [shape: f32[1,1], index: 6, kind: input, shape index: {}]
  %s7 = inlined_call_operand.hbm [shape: f32[1,256], index: 7, kind: output, shape index: {}]
  %s8 = sld [smem:[#allocation0]]
  $region38: #{tpu_custom_call.1} parent=0
    _
  %s10 = ssub.s32 1, %s8
  %s11 = scalar_select 0, %s10, %s8
  %v12 = vstv %s6
  %13 = vst [vmem:[#allocation2] sm:$0x1] %v12
  $region1: #{tpu_custom_call.1} parent=0
    #allocation3 [shape = 'u8[1024]{0}', space=vmem, size = 0x400, scoped, tag = 'output window, operand 0, single buffered']
    #allocation4 [shape = 's32[1]{0}', space=sflag, size = 0x4, scoped, tag = 'scoped memory for tpu_custom_call.1']
    %14 = vsyncpa [#allocation4], 0
    // Predicated region
    $region2: #{tpu_custom_call.1} parent=1 // pred_check
      _
    $region3: #{tpu_custom_call.1} parent=1 // pred_check_branch
      %16 = sbr.rel (0) target = $region5
    $region4: #{tpu_custom_call.1} parent=1 // pred_region
      _
    $region5: #{tpu_custom_call.1} parent=1 // pred_fallthru
      _
    // Predicated region
    $region6: #{tpu_custom_call.1} parent=1 // pred_check
      _
    $region7: #{tpu_custom_call.1} parent=1 // pred_check_branch
      %18 = sbr.rel (0) target = $region9
    $region8: #{tpu_custom_call.1} parent=1 // pred_region
      _
    $region9: #{tpu_custom_call.1} parent=1 // pred_fallthru
      _
    // Predicated region
    $region10: #{tpu_custom_call.1} parent=1 // pred_check
      _
    $region11: #{tpu_custom_call.1} parent=1 // pred_check_branch
      %20 = sbr.rel (0) target = $region13
    $region12: #{tpu_custom_call.1} parent=1 // pred_region
      _
    $region13: #{tpu_custom_call.1} parent=1 // pred_fallthru
      _
    // Predicated region
    $region14: #{tpu_custom_call.1} parent=1 // pred_check
      _
    $region15: #{tpu_custom_call.1} parent=1 // pred_check_branch
      %22 = sbr.rel (0) target = $region17
    $region16: #{tpu_custom_call.1} parent=1 // pred_region
      _
    $region17: #{tpu_custom_call.1} parent=1 // pred_fallthru
      _
    // Predicated region
    $region18: #{tpu_custom_call.1} parent=1 // pred_check
      _
    $region19: #{tpu_custom_call.1} parent=1 // pred_check_branch
      %24 = sbr.rel (0) target = $region21
    $region20: #{tpu_custom_call.1} parent=1 // pred_region
      _
    $region21: #{tpu_custom_call.1} parent=1 // pred_fallthru
      _
    // Predicated region
    $region22: #{tpu_custom_call.1} parent=1 // pred_check
      _
    $region23: #{tpu_custom_call.1} parent=1 // pred_check_branch
      %26 = sbr.rel (0) target = $region25
    $region24: #{tpu_custom_call.1} parent=1 // pred_region
      _
    $region25: #{tpu_custom_call.1} parent=1 // pred_fallthru
      _
    // Predicated region
    $region26: #{tpu_custom_call.1} parent=1 // pred_check
      _
    $region27: #{tpu_custom_call.1} parent=1 // pred_check_branch
      %28 = sbr.rel (0) target = $region29
    $region28: #{tpu_custom_call.1} parent=1 // pred_region
      _
    $region29: #{tpu_custom_call.1} parent=1 // pred_fallthru
      _
    %v29 = vld [vmem:[%s0] sm:$0xff]
    %v30 = vld [vmem:[%s0 + $0x8] sm:$0xff]
    %v31 = vld [vmem:[%s0 + $0x10] sm:$0xff]
    %v32 = vld [vmem:[%s0 + $0x18] sm:$0xff]
    %v33 = vld [vmem:[%s0 + $0x20] sm:$0xff]
    %v34 = vld [vmem:[%s0 + $0x28] sm:$0xff]
    %v35 = vld [vmem:[%s0 + $0x30] sm:$0xff]
    %v36 = vld [vmem:[%s0 + $0x38] sm:$0xff]
    %v37 = vld [vmem:[%s0 + $0x40] sm:$0xff]
    %v38 = vld [vmem:[%s0 + $0x48] sm:$0xff]
    %v39 = vld [vmem:[%s0 + $0x50] sm:$0xff]
    %v40 = vld [vmem:[%s0 + $0x58] sm:$0xff]
    %v41 = vld [vmem:[%s0 + $0x60] sm:$0xff]
    %v42 = vld [vmem:[%s0 + $0x68] sm:$0xff]
    %v43 = vld [vmem:[%s0 + $0x70] sm:$0xff]
    %v44 = vld [vmem:[%s0 + $0x78] sm:$0xff]
    %v45 = vld [vmem:[%s0 + $0x80] sm:$0xff]
    %v46 = vld [vmem:[%s0 + $0x88] sm:$0xff]
    %v47 = vld [vmem:[%s0 + $0x90] sm:$0xff]
    %v48 = vld [vmem:[%s0 + $0x98] sm:$0xff]
    %v49 = vld [vmem:[%s0 + $0xa0] sm:$0xff]
    %v50 = vld [vmem:[%s0 + $0xa8] sm:$0xff]
    %v51 = vld [vmem:[%s0 + $0xb0] sm:$0xff]
    %v52 = vld [vmem:[%s0 + $0xb8] sm:$0xff]
    %v53 = vld [vmem:[%s0 + $0xc0] sm:$0xff]
    %v54 = vld [vmem:[%s0 + $0xc8] sm:$0xff]
    %v55 = vld [vmem:[%s0 + $0xd0] sm:$0xff]
    %v56 = vld [vmem:[%s0 + $0xd8] sm:$0xff]
    %v57 = vld [vmem:[%s0 + $0xe0] sm:$0xff]
    %v58 = vld [vmem:[%s0 + $0xe8] sm:$0xff]
    %v59 = vld [vmem:[%s0 + $0xf0] sm:$0xff]
    %v60 = vld [vmem:[%s0 + $0xf8] sm:$0xff]
    %v61 = vld [vmem:[%s1] sm:$0xff]
    %v62 = vld [vmem:[%s1 + $0x8] sm:$0xff]
    %v63 = vld [vmem:[%s1 + $0x10] sm:$0xff]
    %v64 = vld [vmem:[%s1 + $0x18] sm:$0xff]
    %v65 = vld [vmem:[%s2] sm:$0xff]
    %v66 = vld [vmem:[%s2 + $0x8] sm:$0xff]
    %v67 = vld [vmem:[%s2 + $0x10] sm:$0xff]
    %v68 = vld [vmem:[%s2 + $0x18] sm:$0xff]
    %70 = vset.pattern.permute.xlu0 0
    %71 = vperm.xlu0 %70, %v65
    %v72 = vpop.permute.xlu0 %71
    %75 = vset.pattern.permute.xlu0 0
    %76 = vperm.xlu0 %75, %v66
    %v77 = vpop.permute.xlu0 %76
    %80 = vset.pattern.permute.xlu0 0
    %81 = vperm.xlu0 %80, %v67
    %v82 = vpop.permute.xlu0 %81
    %85 = vset.pattern.permute.xlu0 0
    %86 = vperm.xlu0 %85, %v68
    %v87 = vpop.permute.xlu0 %86
    %vm89 = vcmask 130048
    %v91 = vsel %vm89, %v61, 0
    %v94 = vsel %vm89, %v62, 0
    %v97 = vsel %vm89, %v63, 0
    %v100 = vsel %vm89, %v64, 0
    %v103 = vsel %vm89, %v29, 0
    %v106 = vsel %vm89, %v30, 0
    %v109 = vsel %vm89, %v31, 0
    %v112 = vsel %vm89, %v32, 0
    %v115 = vsel %vm89, %v33, 0
    %v118 = vsel %vm89, %v34, 0
    %v121 = vsel %vm89, %v35, 0
    %v124 = vsel %vm89, %v36, 0
    %v127 = vsel %vm89, %v37, 0
    %v130 = vsel %vm89, %v38, 0
    %v133 = vsel %vm89, %v39, 0
    %v136 = vsel %vm89, %v40, 0
    %v139 = vsel %vm89, %v41, 0
    %v142 = vsel %vm89, %v42, 0
    %v145 = vsel %vm89, %v43, 0
    %v148 = vsel %vm89, %v44, 0
    %v151 = vsel %vm89, %v45, 0
    %v154 = vsel %vm89, %v46, 0
    %v157 = vsel %vm89, %v47, 0
    %v160 = vsel %vm89, %v48, 0
    %v163 = vsel %vm89, %v49, 0
    %v166 = vsel %vm89, %v50, 0
    %v169 = vsel %vm89, %v51, 0
    %v172 = vsel %vm89, %v52, 0
    %v175 = vsel %vm89, %v53, 0
    %v178 = vsel %vm89, %v54, 0
    %v181 = vsel %vm89, %v55, 0
    %v184 = vsel %vm89, %v56, 0
    %v187 = vsel %vm89, %v57, 0
    %v190 = vsel %vm89, %v58, 0
    %v193 = vsel %vm89, %v59, 0
    %v196 = vsel %vm89, %v60, 0
    %198 = vmatprep.subr.mxu0 0.0
    %199 = vmatpush1.xpose.msra.mxu0 %v103
    %200 = vmatprep.subr.mxu0 0.0
    %201 = vmatpush1.xpose.msra.mxu0 %v106
    %202 = vmatprep.subr.mxu0 0.0
    %203 = vmatpush1.xpose.msra.mxu0 %v109
    %204 = vmatprep.subr.mxu0 0.0
    %205 = vmatpush1.xpose.msra.mxu0 %v112
    %206 = vmatprep.subr.mxu0 0.0
    %207 = vmatpush1.xpose.msra.mxu0 %v115
    %208 = vmatprep.subr.mxu0 0.0
    %209 = vmatpush1.xpose.msra.mxu0 %v118
    %210 = vmatprep.subr.mxu0 0.0
    %211 = vmatpush1.xpose.msra.mxu0 %v121
    %212 = vmatprep.subr.mxu0 0.0
    %213 = vmatpush1.xpose.msra.mxu0 %v124
    %214 = vmatprep.subr.mxu0 0.0
    %215 = vmatpush1.xpose.msra.mxu0 %v127
    %216 = vmatprep.subr.mxu0 0.0
    %217 = vmatpush1.xpose.msra.mxu0 %v130
    %218 = vmatprep.subr.mxu0 0.0
    %219 = vmatpush1.xpose.msra.mxu0 %v133
    %220 = vmatprep.subr.mxu0 0.0
    %221 = vmatpush1.xpose.msra.mxu0 %v136
    %222 = vmatprep.subr.mxu0 0.0
    %223 = vmatpush1.xpose.msra.mxu0 %v139
    %224 = vmatprep.subr.mxu0 0.0
    %225 = vmatpush1.xpose.msra.mxu0 %v142
    %226 = vmatprep.subr.mxu0 0.0
    %227 = vmatpush1.xpose.msra.mxu0 %v145
    %228 = vmatprep.subr.mxu0 0.0
    %229 = vmatpush1.xpose.msra.mxu0 %v148
    %230 = vmatprep.subr.mxu0 0.0
    %231 = vmatpush1.xpose.msra.mxu0 %v151
    %232 = vmatprep.subr.mxu0 0.0
    %233 = vmatpush1.xpose.msra.mxu0 %v154
    %234 = vmatprep.subr.mxu0 0.0
    %235 = vmatpush1.xpose.msra.mxu0 %v157
    %236 = vmatprep.subr.mxu0 0.0
    %237 = vmatpush1.xpose.msra.mxu0 %v160
    %238 = vmatprep.subr.mxu0 0.0
    %239 = vmatpush1.xpose.msra.mxu0 %v163
    %240 = vmatprep.subr.mxu0 0.0
    %241 = vmatpush1.xpose.msra.mxu0 %v166
    %242 = vmatprep.subr.mxu0 0.0
    %243 = vmatpush1.xpose.msra.mxu0 %v169
    %244 = vmatprep.subr.mxu0 0.0
    %245 = vmatpush1.xpose.msra.mxu0 %v172
    %246 = vmatprep.subr.mxu0 0.0
    %247 = vmatpush1.xpose.msra.mxu0 %v175
    %248 = vmatprep.subr.mxu0 0.0
    %249 = vmatpush1.xpose.msra.mxu0 %v178
    %250 = vmatprep.subr.mxu0 0.0
    %251 = vmatpush1.xpose.msra.mxu0 %v181
    %252 = vmatprep.subr.mxu0 0.0
    %253 = vmatpush1.xpose.msra.mxu0 %v184
    %254 = vmatprep.subr.mxu0 0.0
    %255 = vmatpush1.xpose.msra.mxu0 %v187
    %256 = vmatprep.subr.mxu0 0.0
    %257 = vmatpush1.xpose.msra.mxu0 %v190
    %258 = vmatprep.subr.mxu0 0.0
    %259 = vmatpush1.xpose.msra.mxu0 %v193
    %260 = vmatprep.subr.mxu0 0.0
    %261 = vmatpush1.xpose.msra.mxu0 %v196
    %262 = vmatprep.mubr.f32.mxu0 0.0
    %263 = vmatmul.mubr.f32.gmra.mrb[0].mxu0 %v91
    %v264 = vpop.f32.mrb[0].mxu0
    %v265 = vadd.f32 %v72, %v264
    %v266 = vpop.f32.mrb[0].mxu0
    %v267 = vadd.f32 %v72, %v266
    %268 = vmatprep.mubr.f32.mxu0 0.0
    %269 = vmatmul.mubr.f32.gmra.mrb[0].mxu0 %v94
    %v270 = vpop.f32.mrb[0].mxu0
    %v271 = vadd.f32 %v77, %v270
    %v272 = vpop.f32.mrb[0].mxu0
    %v273 = vadd.f32 %v77, %v272
    %274 = vmatprep.mubr.f32.mxu0 0.0
    %275 = vmatmul.mubr.f32.gmra.mrb[0].mxu0 %v97
    %v276 = vpop.f32.mrb[0].mxu0
    %v277 = vadd.f32 %v82, %v276
    %v278 = vpop.f32.mrb[0].mxu0
    %v279 = vadd.f32 %v82, %v278
    %280 = vmatprep.mubr.f32.mxu0 0.0
    %281 = vmatmul.mubr.f32.gmra.mrb[0].mxu0 %v100
    %v282 = vpop.f32.mrb[0].mxu0
    %v283 = vadd.f32 %v87, %v282
    %v284 = vpop.f32.mrb[0].mxu0
    %v285 = vadd.f32 %v87, %v284
    %286 = vdwg.mxu0
    %v287 = vmax.f32 %v265, 0.0
    %v288 = vmax.f32 %v267, 0.0
    %v289 = vmax.f32 %v271, 0.0
    %v290 = vmax.f32 %v273, 0.0
    %v291 = vmax.f32 %v277, 0.0
    %v292 = vmax.f32 %v279, 0.0
    %v293 = vmax.f32 %v283, 0.0
    %v294 = vmax.f32 %v285, 0.0
    %v295 = vld [vmem:[%s3] sm:$0xff]
    %v296 = vld [vmem:[%s3 + $0x8] sm:$0xff]
    %v297 = vld [vmem:[%s3 + $0x10] sm:$0xff]
    %v298 = vld [vmem:[%s3 + $0x18] sm:$0xff]
    %v299 = vld [vmem:[%s4] sm:$0xff]
    %v300 = vld [vmem:[%s4 + $0x8] sm:$0xff]
    %v301 = vld [vmem:[%s4 + $0x10] sm:$0xff]
    %v302 = vld [vmem:[%s4 + $0x18] sm:$0xff]
    %304 = vset.pattern.permute.xlu0 0
    %305 = vperm.xlu0 %304, %v299
    %v306 = vpop.permute.xlu0 %305
    %309 = vset.pattern.permute.xlu0 0
    %310 = vperm.xlu0 %309, %v300
    %v311 = vpop.permute.xlu0 %310
    %314 = vset.pattern.permute.xlu0 0
    %315 = vperm.xlu0 %314, %v301
    %v316 = vpop.permute.xlu0 %315
    %319 = vset.pattern.permute.xlu0 0
    %320 = vperm.xlu0 %319, %v302
    %v321 = vpop.permute.xlu0 %320
    %vm323 = vcmask 261120
    %v325 = vsel %vm323, %v295, 0
    %v328 = vsel %vm323, %v296, 0
    %v331 = vsel %vm323, %v297, 0
    %v334 = vsel %vm323, %v298, 0
    %336 = vmatprep.subr.mxu0 %v288
    %337 = vmatpush1.msra.mxu0 %v287
    %338 = vmatprep.subr.mxu0 %v290
    %339 = vmatpush1.msra.mxu0 %v289
    %340 = vmatprep.subr.mxu0 %v292
    %341 = vmatpush1.msra.mxu0 %v291
    %342 = vmatprep.subr.mxu0 %v294
    %343 = vmatpush1.msra.mxu0 %v293
    %344 = vmatprep.subr.mxu0 0.0
    %345 = vmatpush1.msra.mxu0 0.0
    %346 = vmatprep.subr.mxu0 0.0
    %347 = vmatpush1.msra.mxu0 0.0
    %348 = vmatprep.subr.mxu0 0.0
    %349 = vmatpush1.msra.mxu0 0.0
    %350 = vmatprep.subr.mxu0 0.0
    %351 = vmatpush1.msra.mxu0 0.0
    %352 = vmatprep.subr.mxu0 0.0
    %353 = vmatpush1.msra.mxu0 0.0
    %354 = vmatprep.subr.mxu0 0.0
    %355 = vmatpush1.msra.mxu0 0.0
    %356 = vmatprep.subr.mxu0 0.0
    %357 = vmatpush1.msra.mxu0 0.0
    %358 = vmatprep.subr.mxu0 0.0
    %359 = vmatpush1.msra.mxu0 0.0
    %360 = vmatprep.subr.mxu0 0.0
    %361 = vmatpush1.msra.mxu0 0.0
    %362 = vmatprep.subr.mxu0 0.0
    %363 = vmatpush1.msra.mxu0 0.0
    %364 = vmatprep.subr.mxu0 0.0
    %365 = vmatpush1.msra.mxu0 0.0
    %366 = vmatprep.subr.mxu0 0.0
    %367 = vmatpush1.msra.mxu0 0.0
    %368 = vmatprep.subr.mxu0 0.0
    %369 = vmatpush1.msra.mxu0 0.0
    %370 = vmatprep.subr.mxu0 0.0
    %371 = vmatpush1.msra.mxu0 0.0
    %372 = vmatprep.subr.mxu0 0.0
    %373 = vmatpush1.msra.mxu0 0.0
    %374 = vmatprep.subr.mxu0 0.0
    %375 = vmatpush1.msra.mxu0 0.0
    %376 = vmatprep.subr.mxu0 0.0
    %377 = vmatpush1.msra.mxu0 0.0
    %378 = vmatprep.subr.mxu0 0.0
    %379 = vmatpush1.msra.mxu0 0.0
    %380 = vmatprep.subr.mxu0 0.0
    %381 = vmatpush1.msra.mxu0 0.0
    %382 = vmatprep.subr.mxu0 0.0
    %383 = vmatpush1.msra.mxu0 0.0
    %384 = vmatprep.subr.mxu0 0.0
    %385 = vmatpush1.msra.mxu0 0.0
    %386 = vmatprep.subr.mxu0 0.0
    %387 = vmatpush1.msra.mxu0 0.0
    %388 = vmatprep.subr.mxu0 0.0
    %389 = vmatpush1.msra.mxu0 0.0
    %390 = vmatprep.subr.mxu0 0.0
    %391 = vmatpush1.msra.mxu0 0.0
    %392 = vmatprep.subr.mxu0 0.0
    %393 = vmatpush1.msra.mxu0 0.0
    %394 = vmatprep.subr.mxu0 0.0
    %395 = vmatpush1.msra.mxu0 0.0
    %396 = vmatprep.subr.mxu0 0.0
    %397 = vmatpush1.msra.mxu0 0.0
    %398 = vmatprep.subr.mxu0 0.0
    %399 = vmatpush1.msra.mxu0 0.0
    %400 = vmatprep.mubr.f32.mxu0 0.0
    %401 = vmatmul.mubr.f32.gmra.mrb[0].mxu0 %v325
    %v402 = vpop.f32.mrb[0].mxu0
    %v403 = vadd.f32 %v306, %v402
    %v404 = vpop.f32.mrb[0].mxu0
    %v405 = vadd.f32 %v306, %v404
    %406 = vmatprep.mubr.f32.mxu0 0.0
    %407 = vmatmul.mubr.f32.gmra.mrb[0].mxu0 %v328
    %v408 = vpop.f32.mrb[0].mxu0
    %v409 = vadd.f32 %v311, %v408
    %v410 = vpop.f32.mrb[0].mxu0
    %v411 = vadd.f32 %v311, %v410
    %412 = vmatprep.mubr.f32.mxu0 0.0
    %413 = vmatmul.mubr.f32.gmra.mrb[0].mxu0 %v331
    %v414 = vpop.f32.mrb[0].mxu0
    %v415 = vadd.f32 %v316, %v414
    %v416 = vpop.f32.mrb[0].mxu0
    %v417 = vadd.f32 %v316, %v416
    %418 = vmatprep.mubr.f32.mxu0 0.0
    %419 = vmatmul.mubr.f32.gmra.mrb[0].mxu0 %v334
    %v420 = vpop.f32.mrb[0].mxu0
    %v421 = vadd.f32 %v321, %v420
    %v422 = vpop.f32.mrb[0].mxu0
    %v423 = vadd.f32 %v321, %v422
    %424 = vdwg.mxu0
    %v425 = vmax.f32 %v403, 0.0
    %v426 = vmax.f32 %v405, 0.0
    %v427 = vmax.f32 %v409, 0.0
    %v428 = vmax.f32 %v411, 0.0
    %v429 = vmax.f32 %v415, 0.0
    %v430 = vmax.f32 %v417, 0.0
    %v431 = vmax.f32 %v421, 0.0
    %v432 = vmax.f32 %v423, 0.0
    %v433 = vld [vmem:[%s5] sm:$0x1]
    %v434 = vld [vmem:[#allocation2] sm:$0x1]
    %436 = vset.pattern.permute.xlu0 0
    %437 = vperm.xlu0 %436, %v434
    %v438 = vpop.permute.xlu0 %437
    %v440 = vlaneseq
    %v441 = vshrl.u32 %v440, 7
    %v442 = vsub.s32 0, %v441
    %v443 = vrot.slane %v438, %v442
    %v445 = vsel %vm323, %v433, 0
    %447 = vmatprep.subr.mxu0 %v426
    %448 = vmatpush1.msra.mxu0 %v425
    %449 = vmatprep.subr.mxu0 %v428
    %450 = vmatpush1.msra.mxu0 %v427
    %451 = vmatprep.subr.mxu0 %v430
    %452 = vmatpush1.msra.mxu0 %v429
    %453 = vmatprep.subr.mxu0 %v432
    %454 = vmatpush1.msra.mxu0 %v431
    %455 = vmatprep.subr.mxu0 0.0
    %456 = vmatpush1.msra.mxu0 0.0
    %457 = vmatprep.subr.mxu0 0.0
    %458 = vmatpush1.msra.mxu0 0.0
    %459 = vmatprep.subr.mxu0 0.0
    %460 = vmatpush1.msra.mxu0 0.0
    %461 = vmatprep.subr.mxu0 0.0
    %462 = vmatpush1.msra.mxu0 0.0
    %463 = vmatprep.subr.mxu0 0.0
    %464 = vmatpush1.msra.mxu0 0.0
    %465 = vmatprep.subr.mxu0 0.0
    %466 = vmatpush1.msra.mxu0 0.0
    %467 = vmatprep.subr.mxu0 0.0
    %468 = vmatpush1.msra.mxu0 0.0
    %469 = vmatprep.subr.mxu0 0.0
    %470 = vmatpush1.msra.mxu0 0.0
    %471 = vmatprep.subr.mxu0 0.0
    %472 = vmatpush1.msra.mxu0 0.0
    %473 = vmatprep.subr.mxu0 0.0
    %474 = vmatpush1.msra.mxu0 0.0
    %475 = vmatprep.subr.mxu0 0.0
    %476 = vmatpush1.msra.mxu0 0.0
    %477 = vmatprep.subr.mxu0 0.0
    %478 = vmatpush1.msra.mxu0 0.0
    %479 = vmatprep.subr.mxu0 0.0
    %480 = vmatpush1.msra.mxu0 0.0
    %481 = vmatprep.subr.mxu0 0.0
    %482 = vmatpush1.msra.mxu0 0.0
    %483 = vmatprep.subr.mxu0 0.0
    %484 = vmatpush1.msra.mxu0 0.0
    %485 = vmatprep.subr.mxu0 0.0
    %486 = vmatpush1.msra.mxu0 0.0
    %487 = vmatprep.subr.mxu0 0.0
    %488 = vmatpush1.msra.mxu0 0.0
    %489 = vmatprep.subr.mxu0 0.0
    %490 = vmatpush1.msra.mxu0 0.0
    %491 = vmatprep.subr.mxu0 0.0
    %492 = vmatpush1.msra.mxu0 0.0
    %493 = vmatprep.subr.mxu0 0.0
    %494 = vmatpush1.msra.mxu0 0.0
    %495 = vmatprep.subr.mxu0 0.0
    %496 = vmatpush1.msra.mxu0 0.0
    %497 = vmatprep.subr.mxu0 0.0
    %498 = vmatpush1.msra.mxu0 0.0
    %499 = vmatprep.subr.mxu0 0.0
    %500 = vmatpush1.msra.mxu0 0.0
    %501 = vmatprep.subr.mxu0 0.0
    %502 = vmatpush1.msra.mxu0 0.0
    %503 = vmatprep.subr.mxu0 0.0
    %504 = vmatpush1.msra.mxu0 0.0
    %505 = vmatprep.subr.mxu0 0.0
    %506 = vmatpush1.msra.mxu0 0.0
    %507 = vmatprep.subr.mxu0 0.0
    %508 = vmatpush1.msra.mxu0 0.0
    %509 = vmatprep.subr.mxu0 0.0
    %510 = vmatpush1.msra.mxu0 0.0
    %511 = vmatprep.mubr.f32.mxu0 0.0
    %512 = vmatmul.mubr.f32.gmra.mrb[0].mxu0 %v445
    %v513 = vpop.f32.mrb[0].mxu0
    %v514 = vadd.f32 %v443, %v513
    %v515 = vpop.f32.mrb[0].mxu0
    %v516 = vadd.f32 %v443, %v515
    %517 = vdwg.mxu0
    %v520 = vcombine.low %v514, %v516
    %v522 = vunpack.c.l.s4 1966171168
    %v523 = vunpack.c.0.s8 %v522
    %v524 = vlaneseq
    %v525 = vshrl.u32 %v524, 7
    %v526 = vsub.s32 %v523, %v525
    %v527 = vrot.slane %v520, %v526
    %v529 = vunpack.c.l.s4 1966171168
    %v530 = vunpack.c.0.s8 %v529
    %v531 = vlaneseq
    %v532 = vshrl.u32 %v531, 7
    %v533 = vsub.s32 %v530, %v532
    %v534 = vrot.slane %v527, %v533
    %v536 = vlaneseq
    %vm537 = vcmp.ge.s32.totalorder %v536, 0
    %vm538 = vcmp.lt.s32.totalorder %v536, 256
    %vm539 = vmand %vm537, %vm538
    %540 = vst.msk [vmem:[#allocation3] sm:$0x3] %vm539, %v534
    // Predicated region
    $region30: #{tpu_custom_call.1} parent=1 // pred_check
      _
    $region31: #{tpu_custom_call.1} parent=1 // pred_check_branch
      %542 = sbr.rel (0) target = $region33
    $region32: #{tpu_custom_call.1} parent=1 // pred_region
      %s544 = ssub.s32 32, 32
      %545 = vsyncadd [#allocation4], %s544
      %s547 = sshll.u32 [#allocation3], 4
      %s548 = int_to_ptr.vmem [resolvable:$true] %s547
      %550 = dma.vmem_to_hbm [thread:$0]  %s548, 32, %s7, [#allocation4]
    $region33: #{tpu_custom_call.1} parent=1 // pred_fallthru
      _
    // Predicated region
    $region34: #{tpu_custom_call.1} parent=1 // pred_check
      _
    $region35: #{tpu_custom_call.1} parent=1 // pred_check_branch
      %552 = sbr.rel (0) target = $region37
    $region36: #{tpu_custom_call.1} parent=1 // pred_region
      %553 = dma.done [#allocation4], 32
    $region37: #{tpu_custom_call.1} parent=1 // pred_fallthru
      _
    %554 = vsyncpa [#allocation4], 1

</llo_original>
